<compile_context>
chip_gen: v7x
topology: tpu7x:2x2x1
jax: 0.10.0
libtpu: 0.0.40
codegen_flags: <defaults>
</compile_context>

<pallas_src>
import jax
import jax.numpy as jnp
from jax.experimental import pallas as pl
from jax.experimental.pallas import tpu as pltpu


def _round_up(x, m):
    return (x + m - 1) // m * m


def _tpu_info():
    """Per-generation tiling policy: (#TensorCores sharing the grid,
    scoped-VMEM default, safe vmem_limit cap)."""
    kind = ""
    try:
        dev = jax.devices()[0]
        if dev.platform == "tpu":
            kind = dev.device_kind.lower()
    except Exception:
        pass
    if "v7" in kind:
        # 2 TCs/chip, only 64 MiB VMEM per TC -> leave headroom for internal scratch.
        return dict(num_tc=2, scoped_default=32 << 20, vmem_cap=48 << 20)
    if "v6" in kind:
        return dict(num_tc=1, scoped_default=32 << 20, vmem_cap=100 << 20)
    if "v5 lite" in kind or "v5e" in kind or "v5lite" in kind:
        # v5e: single TC, scoped-VMEM default is 16 MiB (not 32), 128 MiB physical.
        return dict(num_tc=1, scoped_default=16 << 20, vmem_cap=100 << 20)
    if "v4" in kind or "v5p" in kind or "v5" in kind:
        # Megacore generations: 2 TCs, 128 MiB VMEM.
        return dict(num_tc=2, scoped_default=32 << 20, vmem_cap=100 << 20)
    # Unknown device (e.g. interpret mode off-TPU): most conservative settings.
    return dict(num_tc=1, scoped_default=16 << 20, vmem_cap=48 << 20)


def _single_buffered_spec(block_shape, index_map):
    """Constant-index blocks never change -> single-buffer them to halve their VMEM."""
    try:
        return pl.BlockSpec(block_shape, index_map, pipeline_mode=pl.Buffered(1))
    except TypeError:
        # Older Pallas without pipeline_mode: fall back to default buffering.
        return pl.BlockSpec(block_shape, index_map)


def video_attn_kernel(audio_ref, video_ref, w_ref, b_ref, out_ref):
    # video_ref: (TB, Dv), w_ref: (Dv, Da), b_ref: (1, Da), audio_ref/out_ref: (TB, Da).
    # Native-dtype MXU matmul, f32 accumulation.
    logits = jnp.dot(video_ref[...], w_ref[...],
                     preferred_element_type=jnp.float32)
    logits = logits + b_ref[...].astype(jnp.float32)

    # Numerically stable softmax over the feature axis (PyTorch Softmax(dim=1)).
    m = jnp.max(logits, axis=1, keepdims=True)
    e = jnp.exp(logits - m)
    denom = jnp.sum(e, axis=1, keepdims=True)
    probs = e / denom  # exact divide: free under the HBM stream, exact vs reference

    # Elementwise multiply in f32 (safe on v5e which lacks bf16 VPU/EUP).
    out_ref[...] = (probs * audio_ref[...].astype(jnp.float32)).astype(out_ref.dtype)


def video_attn(audio_emb, video_emb, weight_t, bias, *, max_tile_b=2048):
    """audio_emb: [B, Da], video_emb: [B, Dv], weight_t: [Dv, Da] (Linear weight
    pre-transposed), bias: [1, Da].  Returns softmax(video @ W + b, axis=1) * audio."""
    B, Dv = video_emb.shape
    Dv_w, Da = weight_t.shape
    assert Dv_w == Dv, "weight_t must be [dim_video, dim_aud]"
    assert audio_emb.shape == (B, Da)
    assert bias.shape == (1, Da)

    out_dtype = audio_emb.dtype
    min_rows = 16 if video_emb.dtype == jnp.bfloat16 else 8

    info = _tpu_info()
    num_tc = info["num_tc"]
    scoped_default = info["scoped_default"]
    vmem_cap = info["vmem_cap"]

    in_b = jnp.dtype(video_emb.dtype).itemsize
    aud_b = jnp.dtype(audio_emb.dtype).itemsize
    out_b = jnp.dtype(out_dtype).itemsize
    w_b = jnp.dtype(weight_t.dtype).itemsize
    b_b = jnp.dtype(bias.dtype).itemsize

    # Resident (single-buffered) blocks + per-row bytes of the double-buffered streams.
    resident_bytes = Dv * Da * w_b + Da * b_b
    per_row_bytes = 2 * (Da * aud_b + Dv * in_b + Da * out_b)

    # --- batch tile: as large as the per-generation VMEM budget allows --------------
    budget = max(vmem_cap - resident_bytes, per_row_bytes * min_rows)
    max_rows_vmem = max(min_rows,
                        int(budget / (per_row_bytes * 1.25)) // min_rows * min_rows)
    tile_b = min(max_tile_b, _round_up(B, min_rows), max_rows_vmem)

    # Split across grid steps only when there is more than one TensorCore to feed.
    if num_tc > 1 and B >= num_tc * min_rows:
        tile_b = min(tile_b, _round_up(pl.cdiv(B, num_tc), min_rows))
    grid_b = pl.cdiv(B, tile_b)
    if num_tc > 1 and grid_b > 1 and grid_b % num_tc != 0:
        # Load-balance the megacore: make the step count a multiple of the core count.
        grid_b = _round_up(grid_b, num_tc)
        tile_b = _round_up(pl.cdiv(B, grid_b), min_rows)
        grid_b = pl.cdiv(B, tile_b)

    # --- VMEM limit: raise only past the per-generation scoped default ---------------
    est_vmem = tile_b * per_row_bytes + resident_bytes
    vmem_limit = None
    if est_vmem > scoped_default:
        vmem_limit = min(_round_up(int(est_vmem * 5 // 4), 1 << 20), vmem_cap)

    cost = pl.CostEstimate(
        flops=2 * B * Dv * Da,
        transcendentals=B * Da,
        bytes_accessed=(B * Da * aud_b + B * Dv * in_b + Dv * Da * w_b
                        + Da * b_b + B * Da * out_b),
    )

    return pl.pallas_call(
        video_attn_kernel,
        out_shape=jax.ShapeDtypeStruct((B, Da), out_dtype),
        grid_spec=pltpu.PrefetchScalarGridSpec(
            num_scalar_prefetch=0,
            grid=(grid_b,),
            in_specs=[
                pl.BlockSpec((tile_b, Da), lambda i: (i, 0)),            # audio (streamed)
                pl.BlockSpec((tile_b, Dv), lambda i: (i, 0)),            # video (streamed)
                _single_buffered_spec((Dv, Da), lambda i: (0, 0)),       # weight (resident)
                _single_buffered_spec((1, Da), lambda i: (0, 0)),        # bias (resident)
            ],
            out_specs=pl.BlockSpec((tile_b, Da), lambda i: (i, 0)),
        ),
        compiler_params=pltpu.CompilerParams(
            dimension_semantics=("parallel",),
            vmem_limit_bytes=vmem_limit,
        ),
        cost_estimate=cost,
    )(audio_emb, video_emb, weight_t, bias)


def reference(audio_emb, video_emb, weight_t, bias):
    logits = (video_emb.astype(jnp.float32) @ weight_t.astype(jnp.float32)
              + bias.astype(jnp.float32))
    return jax.nn.softmax(logits, axis=1) * audio_emb.astype(jnp.float32)


if __name__ == "__main__":
    # Module defaults dim_aud = dim_video = 256; a non-multiple-of-8 batch exercises
    # the partial-last-block path (no wrapper padding / slicing).
    B, DIM_VIDEO, DIM_AUD = 50, 256, 256

    key = jax.random.PRNGKey(0)
    k_audio, k_video, k_w, k_b = jax.random.split(key, 4)

    audio_emb = jax.random.normal(k_audio, (B, DIM_AUD), dtype=jnp.float32)
    video_emb = jax.random.normal(k_video, (B, DIM_VIDEO), dtype=jnp.float32)

    # nn.Linear-style init: U(-1/sqrt(fan_in), 1/sqrt(fan_in)).
    # PyTorch Linear weight is [out, in]; store transposed [in, out] for the kernel.
    bound = 1.0 / (DIM_VIDEO ** 0.5)
    weight_t = jax.random.uniform(k_w, (DIM_VIDEO, DIM_AUD),
                                  minval=-bound, maxval=bound, dtype=jnp.float32)
    bias = jax.random.uniform(k_b, (1, DIM_AUD),
                              minval=-bound, maxval=bound, dtype=jnp.float32)

    out = jax.block_until_ready(video_attn(audio_emb, video_emb, weight_t, bias))

    ref = reference(audio_emb, video_emb, weight_t, bias)
    assert out.shape == (B, DIM_AUD)
    assert jnp.allclose(out, ref, atol=1e-5, rtol=1e-4), "mismatch vs reference"

    print("KERNEL_OK")
</pallas_src>

<mosaic_0001>
module attributes {stable_mosaic.version = 11 : i64} {
  func.func @video_attn_kernel(%arg0: i32, %arg1: memref<56x256xf32, #tpu.memory_space<vmem>>, %arg2: memref<56x256xf32, #tpu.memory_space<vmem>>, %arg3: memref<256x256xf32, #tpu.memory_space<vmem>>, %arg4: memref<1x256xf32, #tpu.memory_space<vmem>>, %arg5: memref<56x256xf32, #tpu.memory_space<vmem>>) attributes {dimension_semantics = [#tpu.dimension_semantics<parallel>], iteration_bounds = array<i64: 1>, scalar_prefetch = 0 : i64, scratch_operands = 0 : i64, tpu.core_type = #tpu.core_type<tc>, window_params = [{transform_indices = @transform_0, window_bounds = array<i64: 56, 256>}, {transform_indices = @transform_1, window_bounds = array<i64: 56, 256>}, {pipeline_mode = #tpu.pipeline_mode<synchronous>, transform_indices = @transform_2, window_bounds = array<i64: 256, 256>}, {pipeline_mode = #tpu.pipeline_mode<synchronous>, transform_indices = @transform_3, window_bounds = array<i64: 1, 256>}, {transform_indices = @transform_4, window_bounds = array<i64: 56, 256>}]} {
    %c0 = arith.constant 0 : index
    %c0_0 = arith.constant 0 : index
    %0 = vector.load %arg2[%c0, %c0_0] : memref<56x256xf32, #tpu.memory_space<vmem>>, vector<56x256xf32>
    %c0_1 = arith.constant 0 : index
    %c0_2 = arith.constant 0 : index
    %1 = vector.load %arg3[%c0_1, %c0_2] : memref<256x256xf32, #tpu.memory_space<vmem>>, vector<256x256xf32>
    %cst = arith.constant dense<0.000000e+00> : vector<56x256xf32>
    %2 = tpu.matmul %0, %1, %cst {dimension_numbers = #tpu.dot_dimension_numbers<[1], [0], [0], [1], [0, 0, 1, 1], [], []>} : vector<56x256xf32>, vector<256x256xf32>, vector<56x256xf32> -> vector<56x256xf32>
    %c0_3 = arith.constant 0 : index
    %c0_4 = arith.constant 0 : index
    %3 = vector.load %arg4[%c0_3, %c0_4] : memref<1x256xf32, #tpu.memory_space<vmem>>, vector<1x256xf32>
    %4 = vector.broadcast %3 : vector<1x256xf32> to vector<56x256xf32>
    %5 = arith.addf %2, %4 : vector<56x256xf32>
    %cst_5 = arith.constant dense<0xFF800000> : vector<56xf32>
    %6 = vector.multi_reduction <maximumf>, %5, %cst_5 [1] : vector<56x256xf32> to vector<56xf32>
    %7 = vector.shape_cast %6 : vector<56xf32> to vector<56x1xf32>
    %8 = vector.broadcast %7 : vector<56x1xf32> to vector<56x256xf32>
    %9 = arith.subf %5, %8 : vector<56x256xf32>
    %10 = math.exp %9 : vector<56x256xf32>
    %cst_6 = arith.constant dense<0.000000e+00> : vector<56xf32>
    %11 = vector.multi_reduction <add>, %10, %cst_6 [1] : vector<56x256xf32> to vector<56xf32>
    %12 = vector.shape_cast %11 : vector<56xf32> to vector<56x1xf32>
    %13 = vector.broadcast %12 : vector<56x1xf32> to vector<56x256xf32>
    %14 = arith.divf %10, %13 : vector<56x256xf32>
    %c0_7 = arith.constant 0 : index
    %c0_8 = arith.constant 0 : index
    %15 = vector.load %arg1[%c0_7, %c0_8] : memref<56x256xf32, #tpu.memory_space<vmem>>, vector<56x256xf32>
    %16 = arith.mulf %14, %15 : vector<56x256xf32>
    %c0_9 = arith.constant 0 : index
    %c0_10 = arith.constant 0 : index
    %17 = vector.load %arg5[%c0_9, %c0_10] : memref<56x256xf32, #tpu.memory_space<vmem>>, vector<56x256xf32>
    tpu.vector_store %arg5[%c0_9, %c0_10], %16 {strides = array<i32>} : memref<56x256xf32, #tpu.memory_space<vmem>>, vector<56x256xf32>,
    return
  }
  func.func @transform_0(%arg0: i32) -> (i32, i32) {
    %c0_i32 = arith.constant 0 : i32
    %c0_i32_0 = arith.constant 0 : i32
    return %arg0, %c0_i32 : i32, i32
  }
  func.func @transform_1(%arg0: i32) -> (i32, i32) {
    %c0_i32 = arith.constant 0 : i32
    %c0_i32_0 = arith.constant 0 : i32
    return %arg0, %c0_i32 : i32, i32
  }
  func.func @transform_2(%arg0: i32) -> (i32, i32) {
    %c0_i32 = arith.constant 0 : i32
    %c0_i32_0 = arith.constant 0 : i32
    %c0_i32_1 = arith.constant 0 : i32
    return %c0_i32, %c0_i32_0 : i32, i32
  }
  func.func @transform_3(%arg0: i32) -> (i32, i32) {
    %c0_i32 = arith.constant 0 : i32
    %c0_i32_0 = arith.constant 0 : i32
    %c0_i32_1 = arith.constant 0 : i32
    return %c0_i32, %c0_i32_0 : i32, i32
  }
  func.func @transform_4(%arg0: i32) -> (i32, i32) {
    %c0_i32 = arith.constant 0 : i32
    %c0_i32_0 = arith.constant 0 : i32
    return %arg0, %c0_i32 : i32, i32
  }
}

</mosaic_0001>

<llo_original>
// kernel: tpu_custom_call.1
$region0: #{tpu_custom_call.1}
  #allocation0 [shape = 'u32[]', space=smem, size = 0x4, offset = 0x4, fixed_abs, tag = 'smem constant byte address 0x4 - core index']
  #allocation1 [shape = 'u32[144,128]{1,0:T(1,128)}', space=vmem, size = 0x12000, scoped, tag = 'internal scratch']
  %s0 = inlined_call_operand.hbm [shape: f32[50,256], index: 0, kind: input, shape index: {}]
  %s1 = inlined_call_operand.hbm [shape: f32[50,256], index: 1, kind: input, shape index: {}]
  %s2 = inlined_call_operand.hbm [shape: f32[256,256], index: 2, kind: input, shape index: {}]
  %s3 = inlined_call_operand.vmem [shape: f32[1,256], index: 3, kind: input, shape index: {}]
  %s4 = inlined_call_operand.hbm [shape: f32[50,256], index: 4, kind: output, shape index: {}]
  %s5 = sld [smem:[#allocation0]]
  $region38: #{tpu_custom_call.1} parent=0
    _
  %s7 = ssub.s32 1, %s5
  %s8 = scalar_select 0, %s7, %s5
  $region1: #{tpu_custom_call.1} parent=0
    #allocation2 [shape = 'u8[57344]{0}', space=vmem, size = 0xe000, scoped, tag = 'input window, operand 0, single buffered']
    #allocation3 [shape = 's32[1]{0}', space=sflag, size = 0x4, scoped, tag = 'scoped memory for tpu_custom_call.1']
    #allocation4 [shape = 's32[1]{0}', space=sflag, size = 0x4, scoped, tag = 'scoped memory for tpu_custom_call.1']
    #allocation5 [shape = 'u8[57344]{0}', space=vmem, size = 0xe000, scoped, tag = 'input window, operand 1, single buffered']
    #allocation6 [shape = 's32[1]{0}', space=sflag, size = 0x4, scoped, tag = 'scoped memory for tpu_custom_call.1']
    #allocation7 [shape = 'u8[262144]{0}', space=vmem, size = 0x40000, scoped, tag = 'input window, operand 2, single buffered']
    #allocation8 [shape = 'u8[57344]{0}', space=vmem, size = 0xe000, scoped, tag = 'output window, operand 0, single buffered']
    %9 = vsyncpa [#allocation3], 0
    %10 = vsyncpa [#allocation6], 0
    %11 = vsyncpa [#allocation4], 0
    // Predicated region
    $region2: #{tpu_custom_call.1} parent=1 // pred_check
      _
    $region3: #{tpu_custom_call.1} parent=1 // pred_check_branch
      %13 = sbr.rel (0) target = $region5
    $region4: #{tpu_custom_call.1} parent=1 // pred_region
      %s15 = ssub.s32 1792, 1792
      %16 = vsyncadd [#allocation3], %s15
      %s17 = sshll.u32 [#allocation2], 4
      %s18 = int_to_ptr.vmem [resolvable:$true] %s17
      %23 = dma.hbm_to_vmem [thread:$0]  %s0, 1792, %s18, [#allocation3], 256, 256, 16
    $region5: #{tpu_custom_call.1} parent=1 // pred_fallthru
      _
    // Predicated region
    $region6: #{tpu_custom_call.1} parent=1 // pred_check
      _
    $region7: #{tpu_custom_call.1} parent=1 // pred_check_branch
      %25 = sbr.rel (0) target = $region9
    $region8: #{tpu_custom_call.1} parent=1 // pred_region
      %s27 = ssub.s32 1792, 1792
      %28 = vsyncadd [#allocation6], %s27
      %s29 = sshll.u32 [#allocation5], 4
      %s30 = int_to_ptr.vmem [resolvable:$true] %s29
      %35 = dma.hbm_to_vmem [thread:$0]  %s1, 1792, %s30, [#allocation6], 256, 256, 16
    $region9: #{tpu_custom_call.1} parent=1 // pred_fallthru
      _
    // Predicated region
    $region10: #{tpu_custom_call.1} parent=1 // pred_check
      _
    $region11: #{tpu_custom_call.1} parent=1 // pred_check_branch
      %37 = sbr.rel (0) target = $region13
    $region12: #{tpu_custom_call.1} parent=1 // pred_region
      %s39 = ssub.s32 8192, 8192
      %40 = vsyncadd [#allocation6], %s39
      %s41 = sshll.u32 [#allocation7], 4
      %s42 = int_to_ptr.vmem [resolvable:$true] %s41
      %47 = dma.hbm_to_vmem [thread:$0]  %s2, 8192, %s42, [#allocation6], 256, 256, 16
    $region13: #{tpu_custom_call.1} parent=1 // pred_fallthru
      _
    // Predicated region
    $region14: #{tpu_custom_call.1} parent=1 // pred_check
      _
    $region15: #{tpu_custom_call.1} parent=1 // pred_check_branch
      %49 = sbr.rel (0) target = $region17
    $region16: #{tpu_custom_call.1} parent=1 // pred_region
      _
    $region17: #{tpu_custom_call.1} parent=1 // pred_fallthru
      _
    // Predicated region
    $region18: #{tpu_custom_call.1} parent=1 // pred_check
      _
    $region19: #{tpu_custom_call.1} parent=1 // pred_check_branch
      %51 = sbr.rel (0) target = $region21
    $region20: #{tpu_custom_call.1} parent=1 // pred_region
      %52 = dma.done [#allocation3], 1792
    $region21: #{tpu_custom_call.1} parent=1 // pred_fallthru
      _
    // Predicated region
    $region22: #{tpu_custom_call.1} parent=1 // pred_check
      _
    $region23: #{tpu_custom_call.1} parent=1 // pred_check_branch
      %54 = sbr.rel (0) target = $region25
    $region24: #{tpu_custom_call.1} parent=1 // pred_region
      %55 = dma.done [#allocation6], 1792
    $region25: #{tpu_custom_call.1} parent=1 // pred_fallthru
      _
    // Predicated region
    $region26: #{tpu_custom_call.1} parent=1 // pred_check
      _
    $region27: #{tpu_custom_call.1} parent=1 // pred_check_branch
      %57 = sbr.rel (0) target = $region29
    $region28: #{tpu_custom_call.1} parent=1 // pred_region
      %58 = dma.done [#allocation6], 8192
    $region29: #{tpu_custom_call.1} parent=1 // pred_fallthru
      _
    %v59 = vld [vmem:[#allocation5] sm:$0xff]
    %v60 = vld [vmem:[#allocation5 + $0x8] sm:$0xff]
    %v61 = vld [vmem:[#allocation5 + $0x10] sm:$0xff]
    %v62 = vld [vmem:[#allocation5 + $0x18] sm:$0xff]
    %v63 = vld [vmem:[#allocation5 + $0x20] sm:$0xff]
    %v64 = vld [vmem:[#allocation5 + $0x28] sm:$0xff]
    %v65 = vld [vmem:[#allocation5 + $0x30] sm:$0xff]
    %v66 = vld [vmem:[#allocation5 + $0x38] sm:$0xff]
    %v67 = vld [vmem:[#allocation5 + $0x40] sm:$0xff]
    %v68 = vld [vmem:[#allocation5 + $0x48] sm:$0xff]
    %v69 = vld [vmem:[#allocation5 + $0x50] sm:$0xff]
    %v70 = vld [vmem:[#allocation5 + $0x58] sm:$0xff]
    %v71 = vld [vmem:[#allocation5 + $0x60] sm:$0xff]
    %v72 = vld [vmem:[#allocation5 + $0x68] sm:$0xff]
    %v73 = vld [vmem:[#allocation7] sm:$0xff]
    %v74 = vld [vmem:[#allocation7 + $0x8] sm:$0xff]
    %v75 = vld [vmem:[#allocation7 + $0x10] sm:$0xff]
    %v76 = vld [vmem:[#allocation7 + $0x18] sm:$0xff]
    %v77 = vld [vmem:[#allocation7 + $0x20] sm:$0xff]
    %v78 = vld [vmem:[#allocation7 + $0x28] sm:$0xff]
    %v79 = vld [vmem:[#allocation7 + $0x30] sm:$0xff]
    %v80 = vld [vmem:[#allocation7 + $0x38] sm:$0xff]
    %v81 = vld [vmem:[#allocation7 + $0x40] sm:$0xff]
    %v82 = vld [vmem:[#allocation7 + $0x48] sm:$0xff]
    %v83 = vld [vmem:[#allocation7 + $0x50] sm:$0xff]
    %v84 = vld [vmem:[#allocation7 + $0x58] sm:$0xff]
    %v85 = vld [vmem:[#allocation7 + $0x60] sm:$0xff]
    %v86 = vld [vmem:[#allocation7 + $0x68] sm:$0xff]
    %v87 = vld [vmem:[#allocation7 + $0x70] sm:$0xff]
    %v88 = vld [vmem:[#allocation7 + $0x78] sm:$0xff]
    %v89 = vld [vmem:[#allocation7 + $0x80] sm:$0xff]
    %v90 = vld [vmem:[#allocation7 + $0x88] sm:$0xff]
    %v91 = vld [vmem:[#allocation7 + $0x90] sm:$0xff]
    %v92 = vld [vmem:[#allocation7 + $0x98] sm:$0xff]
    %v93 = vld [vmem:[#allocation7 + $0xa0] sm:$0xff]
    %v94 = vld [vmem:[#allocation7 + $0xa8] sm:$0xff]
    %v95 = vld [vmem:[#allocation7 + $0xb0] sm:$0xff]
    %v96 = vld [vmem:[#allocation7 + $0xb8] sm:$0xff]
    %v97 = vld [vmem:[#allocation7 + $0xc0] sm:$0xff]
    %v98 = vld [vmem:[#allocation7 + $0xc8] sm:$0xff]
    %v99 = vld [vmem:[#allocation7 + $0xd0] sm:$0xff]
    %v100 = vld [vmem:[#allocation7 + $0xd8] sm:$0xff]
    %v101 = vld [vmem:[#allocation7 + $0xe0] sm:$0xff]
    %v102 = vld [vmem:[#allocation7 + $0xe8] sm:$0xff]
    %v103 = vld [vmem:[#allocation7 + $0xf0] sm:$0xff]
    %v104 = vld [vmem:[#allocation7 + $0xf8] sm:$0xff]
    %v105 = vld [vmem:[#allocation7 + $0x100] sm:$0xff]
    %v106 = vld [vmem:[#allocation7 + $0x108] sm:$0xff]
    %v107 = vld [vmem:[#allocation7 + $0x110] sm:$0xff]
    %v108 = vld [vmem:[#allocation7 + $0x118] sm:$0xff]
    %v109 = vld [vmem:[#allocation7 + $0x120] sm:$0xff]
    %v110 = vld [vmem:[#allocation7 + $0x128] sm:$0xff]
    %v111 = vld [vmem:[#allocation7 + $0x130] sm:$0xff]
    %v112 = vld [vmem:[#allocation7 + $0x138] sm:$0xff]
    %v113 = vld [vmem:[#allocation7 + $0x140] sm:$0xff]
    %v114 = vld [vmem:[#allocation7 + $0x148] sm:$0xff]
    %v115 = vld [vmem:[#allocation7 + $0x150] sm:$0xff]
    %v116 = vld [vmem:[#allocation7 + $0x158] sm:$0xff]
    %v117 = vld [vmem:[#allocation7 + $0x160] sm:$0xff]
    %v118 = vld [vmem:[#allocation7 + $0x168] sm:$0xff]
    %v119 = vld [vmem:[#allocation7 + $0x170] sm:$0xff]
    %v120 = vld [vmem:[#allocation7 + $0x178] sm:$0xff]
    %v121 = vld [vmem:[#allocation7 + $0x180] sm:$0xff]
    %v122 = vld [vmem:[#allocation7 + $0x188] sm:$0xff]
    %v123 = vld [vmem:[#allocation7 + $0x190] sm:$0xff]
    %v124 = vld [vmem:[#allocation7 + $0x198] sm:$0xff]
    %v125 = vld [vmem:[#allocation7 + $0x1a0] sm:$0xff]
    %v126 = vld [vmem:[#allocation7 + $0x1a8] sm:$0xff]
    %v127 = vld [vmem:[#allocation7 + $0x1b0] sm:$0xff]
    %v128 = vld [vmem:[#allocation7 + $0x1b8] sm:$0xff]
    %v129 = vld [vmem:[#allocation7 + $0x1c0] sm:$0xff]
    %v130 = vld [vmem:[#allocation7 + $0x1c8] sm:$0xff]
    %v131 = vld [vmem:[#allocation7 + $0x1d0] sm:$0xff]
    %v132 = vld [vmem:[#allocation7 + $0x1d8] sm:$0xff]
    %v133 = vld [vmem:[#allocation7 + $0x1e0] sm:$0xff]
    %v134 = vld [vmem:[#allocation7 + $0x1e8] sm:$0xff]
    %v135 = vld [vmem:[#allocation7 + $0x1f0] sm:$0xff]
    %v136 = vld [vmem:[#allocation7 + $0x1f8] sm:$0xff]
    %v137 = vld [vmem:[%s3] sm:$0x3]
    %v139 = vlaneseq
    %v140 = vshrl.u32 %v139, 7
    %v141 = vsub.s32 0, %v140
    %v142 = vrot.slane %v137, %v141
    %v143 = vlaneseq
    %v144 = vshrl.u32 %v143, 7
    %v145 = vsub.s32 1, %v144
    %v146 = vrot.slane %v137, %v145
    %149 = vmatprep.subr.mxu0 %v74
    %150 = vmatpush1.msra.mxu0 %v73
    %151 = vmatprep.subr.mxu0 %v76
    %152 = vmatpush1.msra.mxu0 %v75
    %153 = vmatprep.subr.mxu0 %v78
    %154 = vmatpush1.msra.mxu0 %v77
    %155 = vmatprep.subr.mxu0 %v80
    %156 = vmatpush1.msra.mxu0 %v79
    %157 = vmatprep.subr.mxu0 %v82
    %158 = vmatpush1.msra.mxu0 %v81
    %159 = vmatprep.subr.mxu0 %v84
    %160 = vmatpush1.msra.mxu0 %v83
    %161 = vmatprep.subr.mxu0 %v86
    %162 = vmatpush1.msra.mxu0 %v85
    %163 = vmatprep.subr.mxu0 %v88
    %164 = vmatpush1.msra.mxu0 %v87
    %165 = vmatprep.subr.mxu0 %v90
    %166 = vmatpush1.msra.mxu0 %v89
    %167 = vmatprep.subr.mxu0 %v92
    %168 = vmatpush1.msra.mxu0 %v91
    %169 = vmatprep.subr.mxu0 %v94
    %170 = vmatpush1.msra.mxu0 %v93
    %171 = vmatprep.subr.mxu0 %v96
    %172 = vmatpush1.msra.mxu0 %v95
    %173 = vmatprep.subr.mxu0 %v98
    %174 = vmatpush1.msra.mxu0 %v97
    %175 = vmatprep.subr.mxu0 %v100
    %176 = vmatpush1.msra.mxu0 %v99
    %177 = vmatprep.subr.mxu0 %v102
    %178 = vmatpush1.msra.mxu0 %v101
    %179 = vmatprep.subr.mxu0 %v104
    %180 = vmatpush1.msra.mxu0 %v103
    %181 = vmatprep.subr.mxu0 %v106
    %182 = vmatpush1.msra.mxu0 %v105
    %183 = vmatprep.subr.mxu0 %v108
    %184 = vmatpush1.msra.mxu0 %v107
    %185 = vmatprep.subr.mxu0 %v110
    %186 = vmatpush1.msra.mxu0 %v109
    %187 = vmatprep.subr.mxu0 %v112
    %188 = vmatpush1.msra.mxu0 %v111
    %189 = vmatprep.subr.mxu0 %v114
    %190 = vmatpush1.msra.mxu0 %v113
    %191 = vmatprep.subr.mxu0 %v116
    %192 = vmatpush1.msra.mxu0 %v115
    %193 = vmatprep.subr.mxu0 %v118
    %194 = vmatpush1.msra.mxu0 %v117
    %195 = vmatprep.subr.mxu0 %v120
    %196 = vmatpush1.msra.mxu0 %v119
    %197 = vmatprep.subr.mxu0 %v122
    %198 = vmatpush1.msra.mxu0 %v121
    %199 = vmatprep.subr.mxu0 %v124
    %200 = vmatpush1.msra.mxu0 %v123
    %201 = vmatprep.subr.mxu0 %v126
    %202 = vmatpush1.msra.mxu0 %v125
    %203 = vmatprep.subr.mxu0 %v128
    %204 = vmatpush1.msra.mxu0 %v127
    %205 = vmatprep.subr.mxu0 %v130
    %206 = vmatpush1.msra.mxu0 %v129
    %207 = vmatprep.subr.mxu0 %v132
    %208 = vmatpush1.msra.mxu0 %v131
    %209 = vmatprep.subr.mxu0 %v134
    %210 = vmatpush1.msra.mxu0 %v133
    %211 = vmatprep.subr.mxu0 %v136
    %212 = vmatpush1.msra.mxu0 %v135
    %213 = vmatprep.mubr.f32.mxu0 %v60
    %214 = vmatmul.mubr.f32.gmra.mrb[0].mxu0 %v59
    %v215 = vpop.f32.mrb[0].mxu0
    %v216 = vadd.f32 %v142, %v215
    %v217 = vpop.f32.mrb[0].mxu0
    %v218 = vadd.f32 %v146, %v217
    %219 = vmatprep.mubr.f32.mxu0 %v62
    %220 = vmatmul.mubr.f32.gmra.mrb[0].mxu0 %v61
    %v221 = vpop.f32.mrb[0].mxu0
    %v222 = vadd.f32 %v142, %v221
    %v223 = vpop.f32.mrb[0].mxu0
    %v224 = vadd.f32 %v146, %v223
    %225 = vmatprep.mubr.f32.mxu0 %v64
    %226 = vmatmul.mubr.f32.gmra.mrb[0].mxu0 %v63
    %v227 = vpop.f32.mrb[0].mxu0
    %v228 = vadd.f32 %v142, %v227
    %v229 = vpop.f32.mrb[0].mxu0
    %v230 = vadd.f32 %v146, %v229
    %231 = vmatprep.mubr.f32.mxu0 %v66
    %232 = vmatmul.mubr.f32.gmra.mrb[0].mxu0 %v65
    %v233 = vpop.f32.mrb[0].mxu0
    %v234 = vadd.f32 %v142, %v233
    %v235 = vpop.f32.mrb[0].mxu0
    %v236 = vadd.f32 %v146, %v235
    %237 = vmatprep.mubr.f32.mxu0 %v68
    %238 = vmatmul.mubr.f32.gmra.mrb[0].mxu0 %v67
    %v239 = vpop.f32.mrb[0].mxu0
    %v240 = vadd.f32 %v142, %v239
    %v241 = vpop.f32.mrb[0].mxu0
    %v242 = vadd.f32 %v146, %v241
    %243 = vmatprep.mubr.f32.mxu0 %v70
    %244 = vmatmul.mubr.f32.gmra.mrb[0].mxu0 %v69
    %v245 = vpop.f32.mrb[0].mxu0
    %v246 = vadd.f32 %v142, %v245
    %v247 = vpop.f32.mrb[0].mxu0
    %v248 = vadd.f32 %v146, %v247
    %249 = vmatprep.mubr.f32.mxu0 %v72
    %250 = vmatmul.mubr.f32.gmra.mrb[0].mxu0 %v71
    %v251 = vpop.f32.mrb[0].mxu0
    %v252 = vadd.f32 %v142, %v251
    %v253 = vpop.f32.mrb[0].mxu0
    %v254 = vadd.f32 %v146, %v253
    %255 = vdwg.mxu0
    %v256 = vmax.f32 %v216, %v218
    %257 = vmax.xlane.f32.xlu0 %v256
    %v258 = vpop.xlane.xlu0 %257
    %v259 = vmax.f32 %v222, %v224
    %260 = vmax.xlane.f32.xlu0 %v259
    %v261 = vpop.xlane.xlu0 %260
    %v262 = vmax.f32 %v228, %v230
    %263 = vmax.xlane.f32.xlu0 %v262
    %v264 = vpop.xlane.xlu0 %263
    %v265 = vmax.f32 %v234, %v236
    %266 = vmax.xlane.f32.xlu0 %v265
    %v267 = vpop.xlane.xlu0 %266
    %v268 = vmax.f32 %v240, %v242
    %269 = vmax.xlane.f32.xlu0 %v268
    %v270 = vpop.xlane.xlu0 %269
    %v271 = vmax.f32 %v246, %v248
    %272 = vmax.xlane.f32.xlu0 %v271
    %v273 = vpop.xlane.xlu0 %272
    %v274 = vmax.f32 %v252, %v254
    %275 = vmax.xlane.f32.xlu0 %v274
    %v276 = vpop.xlane.xlu0 %275
    %v277 = vsub.f32 %v216, %v258
    %v278 = vsub.f32 %v218, %v258
    %v279 = vsub.f32 %v222, %v261
    %v280 = vsub.f32 %v224, %v261
    %v281 = vsub.f32 %v228, %v264
    %v282 = vsub.f32 %v230, %v264
    %v283 = vsub.f32 %v234, %v267
    %v284 = vsub.f32 %v236, %v267
    %v285 = vsub.f32 %v240, %v270
    %v286 = vsub.f32 %v242, %v270
    %v287 = vsub.f32 %v246, %v273
    %v288 = vsub.f32 %v248, %v273
    %v289 = vsub.f32 %v252, %v276
    %v290 = vsub.f32 %v254, %v276
    %v291 = vmul.f32 %v277, 1.442695
    %v292 = vpow.pop %v291
    %v293 = vmul.f32 %v278, 1.442695
    %v294 = vpow.pop %v293
    %v295 = vmul.f32 %v279, 1.442695
    %v296 = vpow.pop %v295
    %v297 = vmul.f32 %v280, 1.442695
    %v298 = vpow.pop %v297
    %v299 = vmul.f32 %v281, 1.442695
    %v300 = vpow.pop %v299
    %v301 = vmul.f32 %v282, 1.442695
    %v302 = vpow.pop %v301
    %v303 = vmul.f32 %v283, 1.442695
    %v304 = vpow.pop %v303
    %v305 = vmul.f32 %v284, 1.442695
    %v306 = vpow.pop %v305
    %v307 = vmul.f32 %v285, 1.442695
    %v308 = vpow.pop %v307
    %v309 = vmul.f32 %v286, 1.442695
    %v310 = vpow.pop %v309
    %v311 = vmul.f32 %v287, 1.442695
    %v312 = vpow.pop %v311
    %v313 = vmul.f32 %v288, 1.442695
    %v314 = vpow.pop %v313
    %v315 = vmul.f32 %v289, 1.442695
    %v316 = vpow.pop %v315
    %v317 = vmul.f32 %v290, 1.442695
    %v318 = vpow.pop %v317
    %v319 = vadd.f32 %v292, %v294
    %320 = vadd.xlane.f32.xlu0 %v319
    %v321 = vpop.xlane.xlu0 %320
    %v322 = vadd.f32 %v296, %v298
    %323 = vadd.xlane.f32.xlu0 %v322
    %v324 = vpop.xlane.xlu0 %323
    %v325 = vadd.f32 %v300, %v302
    %326 = vadd.xlane.f32.xlu0 %v325
    %v327 = vpop.xlane.xlu0 %326
    %v328 = vadd.f32 %v304, %v306
    %329 = vadd.xlane.f32.xlu0 %v328
    %v330 = vpop.xlane.xlu0 %329
    %v331 = vadd.f32 %v308, %v310
    %332 = vadd.xlane.f32.xlu0 %v331
    %v333 = vpop.xlane.xlu0 %332
    %v334 = vadd.f32 %v312, %v314
    %335 = vadd.xlane.f32.xlu0 %v334
    %v336 = vpop.xlane.xlu0 %335
    %v337 = vadd.f32 %v316, %v318
    %338 = vadd.xlane.f32.xlu0 %v337
    %v339 = vpop.xlane.xlu0 %338
    %v340 = vrcp.pop %v321
    %v341 = vmul.f32 %v292, %v340
    %v342 = vmul.f32 %v294, %v340
    %v343 = vrcp.pop %v324
    %v344 = vmul.f32 %v296, %v343
    %v345 = vmul.f32 %v298, %v343
    %v346 = vrcp.pop %v327
    %v347 = vmul.f32 %v300, %v346
    %v348 = vmul.f32 %v302, %v346
    %v349 = vrcp.pop %v330
    %v350 = vmul.f32 %v304, %v349
    %v351 = vmul.f32 %v306, %v349
    %v352 = vrcp.pop %v333
    %v353 = vmul.f32 %v308, %v352
    %v354 = vmul.f32 %v310, %v352
    %v355 = vrcp.pop %v336
    %v356 = vmul.f32 %v312, %v355
    %v357 = vmul.f32 %v314, %v355
    %v358 = vrcp.pop %v339
    %v359 = vmul.f32 %v316, %v358
    %v360 = vmul.f32 %v318, %v358
    %v361 = vld [vmem:[#allocation2] sm:$0xff]
    %v362 = vld [vmem:[#allocation2 + $0x8] sm:$0xff]
    %v363 = vld [vmem:[#allocation2 + $0x10] sm:$0xff]
    %v364 = vld [vmem:[#allocation2 + $0x18] sm:$0xff]
    %v365 = vld [vmem:[#allocation2 + $0x20] sm:$0xff]
    %v366 = vld [vmem:[#allocation2 + $0x28] sm:$0xff]
    %v367 = vld [vmem:[#allocation2 + $0x30] sm:$0xff]
    %v368 = vld [vmem:[#allocation2 + $0x38] sm:$0xff]
    %v369 = vld [vmem:[#allocation2 + $0x40] sm:$0xff]
    %v370 = vld [vmem:[#allocation2 + $0x48] sm:$0xff]
    %v371 = vld [vmem:[#allocation2 + $0x50] sm:$0xff]
    %v372 = vld [vmem:[#allocation2 + $0x58] sm:$0xff]
    %v373 = vld [vmem:[#allocation2 + $0x60] sm:$0xff]
    %v374 = vld [vmem:[#allocation2 + $0x68] sm:$0xff]
    %v375 = vmul.f32 %v341, %v361
    %v376 = vmul.f32 %v342, %v362
    %v377 = vmul.f32 %v344, %v363
    %v378 = vmul.f32 %v345, %v364
    %v379 = vmul.f32 %v347, %v365
    %v380 = vmul.f32 %v348, %v366
    %v381 = vmul.f32 %v350, %v367
    %v382 = vmul.f32 %v351, %v368
    %v383 = vmul.f32 %v353, %v369
    %v384 = vmul.f32 %v354, %v370
    %v385 = vmul.f32 %v356, %v371
    %v386 = vmul.f32 %v357, %v372
    %v387 = vmul.f32 %v359, %v373
    %v388 = vmul.f32 %v360, %v374
    %389 = vst [vmem:[#allocation8] sm:$0xff] %v375
    %390 = vst [vmem:[#allocation8 + $0x8] sm:$0xff] %v376
    %391 = vst [vmem:[#allocation8 + $0x10] sm:$0xff] %v377
    %392 = vst [vmem:[#allocation8 + $0x18] sm:$0xff] %v378
    %393 = vst [vmem:[#allocation8 + $0x20] sm:$0xff] %v379
    %394 = vst [vmem:[#allocation8 + $0x28] sm:$0xff] %v380
    %395 = vst [vmem:[#allocation8 + $0x30] sm:$0xff] %v381
    %396 = vst [vmem:[#allocation8 + $0x38] sm:$0xff] %v382
    %397 = vst [vmem:[#allocation8 + $0x40] sm:$0xff] %v383
    %398 = vst [vmem:[#allocation8 + $0x48] sm:$0xff] %v384
    %399 = vst [vmem:[#allocation8 + $0x50] sm:$0xff] %v385
    %400 = vst [vmem:[#allocation8 + $0x58] sm:$0xff] %v386
    %401 = vst [vmem:[#allocation8 + $0x60] sm:$0xff] %v387
    %402 = vst [vmem:[#allocation8 + $0x68] sm:$0xff] %v388
    // Predicated region
    $region30: #{tpu_custom_call.1} parent=1 // pred_check
      _
    $region31: #{tpu_custom_call.1} parent=1 // pred_check_branch
      %404 = sbr.rel (0) target = $region33
    $region32: #{tpu_custom_call.1} parent=1 // pred_region
      %s406 = ssub.s32 1792, 1792
      %407 = vsyncadd [#allocation4], %s406
      %s408 = sshll.u32 [#allocation8], 4
      %s409 = int_to_ptr.vmem [resolvable:$true] %s408
      %414 = dma.vmem_to_hbm [thread:$0]  %s409, 1792, %s4, [#allocation4], 256, 256, 16
    $region33: #{tpu_custom_call.1} parent=1 // pred_fallthru
      _
    // Predicated region
    $region34: #{tpu_custom_call.1} parent=1 // pred_check
      _
    $region35: #{tpu_custom_call.1} parent=1 // pred_check_branch
      %416 = sbr.rel (0) target = $region37
    $region36: #{tpu_custom_call.1} parent=1 // pred_region
      %417 = dma.done [#allocation4], 1792
    $region37: #{tpu_custom_call.1} parent=1 // pred_fallthru
      _
    %418 = vsyncpa [#allocation3], 1
    %419 = vsyncpa [#allocation6], 1
    %420 = vsyncpa [#allocation4], 1

</llo_original>
